<compile_context>
chip_gen: v6e
topology: v6e:2x2x1
jax: 0.10.0
libtpu: 0.0.40
codegen_flags: <defaults>
</compile_context>

<pallas_src>
import functools

import jax
import jax.numpy as jnp
from jax.experimental import pallas as pl
from jax.experimental.pallas import tpu as pltpu


# ----------------------------------------------------------------------------
# Pallas kernel: (M, N, K)-tiled matmul with f32 VMEM accumulator.
# ----------------------------------------------------------------------------
def _matmul_kernel(x_ref, w_ref, o_ref, acc_ref):
    @pl.when(pl.program_id(2) == 0)
    def _():
        acc_ref[...] = jnp.zeros_like(acc_ref)

    acc_ref[...] += jnp.dot(
        x_ref[...], w_ref[...], preferred_element_type=jnp.float32
    )

    @pl.when(pl.program_id(2) == pl.num_programs(2) - 1)
    def _():
        o_ref[...] = acc_ref[...].astype(o_ref.dtype)


def _round_up(x, m):
    return ((x + m - 1) // m) * m


def _pick_divisor_tile(dim, align, cap):
    """`dim` is a multiple of `align`; return the largest tile <= cap (multiple
    of `align`) that divides `dim`, falling back to `align`."""
    t = (min(cap, dim) // align) * align
    while t > align:
        if dim % t == 0:
            return t
        t -= align
    return align


def tiled_matmul_f32(x, w):
    """y = x @ w.  x: (M, K) f32, w: (K, N) f32  ->  (M, N) f32.

    K and N are zero-padded to multiples of 128 (lane-dense, unmasked vector
    loads/stores); M is split into ~512-row tiles with a zero-padded tail.
    """
    M, K = x.shape
    K2, N = w.shape
    assert K == K2, (K, K2)

    Kp = _round_up(K, 128)
    Np = _round_up(N, 128)
    tk = _pick_divisor_tile(Kp, 128, 512)
    tn = _pick_divisor_tile(Np, 128, 512)

    # M tile: balance into ~512-row tiles (multiple of 8), pad the tail.
    n_m = max(1, -(-M // 512))
    tm = _round_up(-(-M // n_m), 8)
    Mp = tm * n_m

    if (Mp, Kp) != (M, K):
        x = jnp.pad(x, ((0, Mp - M), (0, Kp - K)))
    if (Kp, Np) != (K, N):
        w = jnp.pad(w, ((0, Kp - K), (0, Np - N)))

    grid = (Mp // tm, Np // tn, Kp // tk)
    out = pl.pallas_call(
        _matmul_kernel,
        out_shape=jax.ShapeDtypeStruct((Mp, Np), jnp.float32),
        grid=grid,
        in_specs=[
            pl.BlockSpec((tm, tk), lambda i, j, k: (i, k)),
            pl.BlockSpec((tk, tn), lambda i, j, k: (k, j)),
        ],
        out_specs=pl.BlockSpec((tm, tn), lambda i, j, k: (i, j)),
        scratch_shapes=[pltpu.VMEM((tm, tn), jnp.float32)],
        compiler_params=pltpu.CompilerParams(
            dimension_semantics=("parallel", "parallel", "arbitrary")
        ),
    )(x, w)
    return out[:M, :N]


# ----------------------------------------------------------------------------
# spectral_dfs_padding on split real/imag float planes (XLA glue, no complex math).
# ----------------------------------------------------------------------------
def spectral_dfs_padding_ri(xr, xi, padding, ew_padding=0):
    if padding == 0:
        return xr, xi
    B, C, H, W = xr.shape
    cfg = ((0, 0), (0, 0), (padding, padding), (0, 0))
    outr = jnp.pad(xr, cfg, mode="reflect")
    outi = jnp.pad(xi, cfg, mode="reflect")

    # phase_shift = [1, -1, 1, -1, ...] over the ORIGINAL width, applied to the
    # reflected top/bottom rows only.
    phase = jnp.where(jnp.arange(W) % 2 == 1, -1.0, 1.0).astype(xr.dtype)

    def apply_phase(o):
        top = o[:, :, :padding] * phase[None, None, None, :]
        mid = o[:, :, padding:-padding]
        bot = o[:, :, -padding:] * phase[None, None, None, :]
        return jnp.concatenate([top, mid, bot], axis=2)

    outr = apply_phase(outr)
    outi = apply_phase(outi)

    if ew_padding != 0:
        # reflect-pad left by ew (conjugated), zero-pad right by ew.
        leftr = outr[:, :, :, ew_padding:0:-1]
        lefti = -outi[:, :, :, ew_padding:0:-1]  # conj == negate imag part
        zeros = jnp.zeros(outr.shape[:3] + (ew_padding,), outr.dtype)
        outr = jnp.concatenate([leftr, outr, zeros], axis=3)
        outi = jnp.concatenate([lefti, outi, zeros], axis=3)
    return outr, outi


# ----------------------------------------------------------------------------
# SlowComplexConv2d forward.
# ----------------------------------------------------------------------------
@functools.partial(jax.jit, static_argnames=("groups",))
def slow_complex_conv2d(x, weight, groups=1):
    """x: (B, Cin, H, W) complex64; weight: (Cout, Cin//groups, kh, kw) complex64."""
    B, Cin, H, W = x.shape
    Cout, Cin_g, kh, kw = weight.shape
    assert Cin == Cin_g * groups and Cout % groups == 0
    ph, pw = kh // 2, kw // 2

    xr = jnp.real(x).astype(jnp.float32)
    xi = jnp.imag(x).astype(jnp.float32)
    xr, xi = spectral_dfs_padding_ri(xr, xi, ph, pw)
    Hp, Wp = xr.shape[2], xr.shape[3]
    Ho, Wo = Hp - kh + 1, Wp - kw + 1

    wr = jnp.real(weight).astype(jnp.float32)
    wi = jnp.imag(weight).astype(jnp.float32)
    Cout_g = Cout // groups

    outs_r, outs_i = [], []
    for g in range(groups):
        xrg = xr[:, g * Cin_g:(g + 1) * Cin_g]
        xig = xi[:, g * Cin_g:(g + 1) * Cin_g]
        wrg = wr[g * Cout_g:(g + 1) * Cout_g]  # (Cout_g, Cin_g, kh, kw)
        wig = wi[g * Cout_g:(g + 1) * Cout_g]

        # channels-last, channel-packed [real | imag] input: (B, Hp, Wp, 2*Cin_g)
        x2 = jnp.concatenate(
            [jnp.transpose(xrg, (0, 2, 3, 1)), jnp.transpose(xig, (0, 2, 3, 1))],
            axis=-1,
        )

        # im2col with K-axis order (ky, kx, [real chans | imag chans]), built
        # directly at the lane-aligned width so the Pallas call does no K-pad copy.
        Kg = kh * kw * 2 * Cin_g
        Kpad = _round_up(Kg, 128)
        patches = [
            x2[:, ky:ky + Ho, kx:kx + Wo, :]
            for ky in range(kh) for kx in range(kw)
        ]
        if Kpad != Kg:
            patches.append(jnp.zeros((B, Ho, Wo, Kpad - Kg), jnp.float32))
        X = jnp.concatenate(patches, axis=-1).reshape(B * Ho * Wo, Kpad)

        # Packed complex weight: per (ky,kx)  [[wr^T, wi^T], [-wi^T, wr^T]].
        wr_t = jnp.transpose(wrg, (2, 3, 1, 0))  # (kh, kw, Cin_g, Cout_g)
        wi_t = jnp.transpose(wig, (2, 3, 1, 0))
        top = jnp.concatenate([wr_t, wi_t], axis=-1)    # rows for real channels
        bot = jnp.concatenate([-wi_t, wr_t], axis=-1)   # rows for imag channels
        W2 = jnp.concatenate([top, bot], axis=2).reshape(Kg, 2 * Cout_g)
        if Kpad != Kg:
            W2 = jnp.pad(W2, ((0, Kpad - Kg), (0, 0)))

        out2 = tiled_matmul_f32(X, W2)                  # (B*Ho*Wo, 2*Cout_g)
        out2 = out2.reshape(B, Ho, Wo, 2 * Cout_g)
        outs_r.append(jnp.transpose(out2[..., :Cout_g], (0, 3, 1, 2)))
        outs_i.append(jnp.transpose(out2[..., Cout_g:], (0, 3, 1, 2)))

    out_r = jnp.concatenate(outs_r, axis=1) if groups > 1 else outs_r[0]
    out_i = jnp.concatenate(outs_i, axis=1) if groups > 1 else outs_i[0]
    return jax.lax.complex(out_r, out_i)


# ----------------------------------------------------------------------------
# Pure-JAX reference (real-arithmetic direct conv) for correctness checking.
# ----------------------------------------------------------------------------
def reference_complex_conv(x, weight, groups=1):
    B, Cin, H, W = x.shape
    Cout, Cin_g, kh, kw = weight.shape
    ph, pw = kh // 2, kw // 2
    xr = jnp.real(x).astype(jnp.float32)
    xi = jnp.imag(x).astype(jnp.float32)
    xr, xi = spectral_dfs_padding_ri(xr, xi, ph, pw)
    Hp, Wp = xr.shape[2], xr.shape[3]
    Ho, Wo = Hp - kh + 1, Wp - kw + 1
    wr = jnp.real(weight).astype(jnp.float32)
    wi = jnp.imag(weight).astype(jnp.float32)
    Cout_g = Cout // groups
    outs_r, outs_i = [], []
    for g in range(groups):
        xrg = xr[:, g * Cin_g:(g + 1) * Cin_g]
        xig = xi[:, g * Cin_g:(g + 1) * Cin_g]
        wrg = wr[g * Cout_g:(g + 1) * Cout_g]
        wig = wi[g * Cout_g:(g + 1) * Cout_g]
        accr = jnp.zeros((B, Cout_g, Ho, Wo), jnp.float32)
        acci = jnp.zeros((B, Cout_g, Ho, Wo), jnp.float32)
        for ky in range(kh):
            for kx in range(kw):
                pr = xrg[:, :, ky:ky + Ho, kx:kx + Wo]
                pi = xig[:, :, ky:ky + Ho, kx:kx + Wo]
                accr = accr + jnp.einsum("bchw,oc->bohw", pr, wrg[:, :, ky, kx]) \
                            - jnp.einsum("bchw,oc->bohw", pi, wig[:, :, ky, kx])
                acci = acci + jnp.einsum("bchw,oc->bohw", pr, wig[:, :, ky, kx]) \
                            + jnp.einsum("bchw,oc->bohw", pi, wrg[:, :, ky, kx])
        outs_r.append(accr)
        outs_i.append(acci)
    out_r = jnp.concatenate(outs_r, axis=1) if groups > 1 else outs_r[0]
    out_i = jnp.concatenate(outs_i, axis=1) if groups > 1 else outs_i[0]
    return jax.lax.complex(out_r, out_i)


if __name__ == "__main__":
    key = jax.random.PRNGKey(0)
    B, Cin, Cout, H, W = 2, 4, 4, 16, 16
    kh, kw = 3, 3
    groups = 1

    k1, k2, k3, k4 = jax.random.split(key, 4)
    x = jax.lax.complex(
        jax.random.normal(k1, (B, Cin, H, W), jnp.float32),
        jax.random.normal(k2, (B, Cin, H, W), jnp.float32),
    )
    fan_in = (Cin // groups) * kh * kw
    wscale = 1.0 / jnp.sqrt(jnp.float32(fan_in))
    weight = jax.lax.complex(
        wscale * jax.random.normal(k3, (Cout, Cin // groups, kh, kw), jnp.float32),
        wscale * jax.random.normal(k4, (Cout, Cin // groups, kh, kw), jnp.float32),
    )

    out = slow_complex_conv2d(x, weight, groups=groups)
    out = jax.block_until_ready(out)

    ref = jax.block_until_ready(reference_complex_conv(x, weight, groups=groups))

    assert out.shape == (B, Cout, H, W), out.shape
    assert out.shape == ref.shape, (out.shape, ref.shape)
    assert bool(jnp.all(jnp.isfinite(jnp.real(out)))), "non-finite real part"
    assert bool(jnp.all(jnp.isfinite(jnp.imag(out)))), "non-finite imag part"
    err = float(jnp.max(jnp.abs(out - ref)))
    assert err < 1e-3, f"max abs error vs reference: {err}"
    print("KERNEL_OK")
</pallas_src>

<mosaic_0001>
module attributes {stable_mosaic.version = 11 : i64} {
  func.func @_matmul_kernel(%arg0: i32, %arg1: i32, %arg2: i32, %arg3: memref<512x128xf32, #tpu.memory_space<vmem>>, %arg4: memref<128x128xf32, #tpu.memory_space<vmem>>, %arg5: memref<512x128xf32, #tpu.memory_space<vmem>>, %arg6: memref<512x128xf32, #tpu.memory_space<vmem>>) attributes {dimension_semantics = [#tpu.dimension_semantics<parallel>, #tpu.dimension_semantics<parallel>, #tpu.dimension_semantics<arbitrary>], iteration_bounds = array<i64: 1, 1, 1>, scalar_prefetch = 0 : i64, scratch_operands = 1 : i64, tpu.core_type = #tpu.core_type<tc>, window_params = [{transform_indices = @transform_0, window_bounds = array<i64: 512, 128>}, {transform_indices = @transform_1, window_bounds = array<i64: 128, 128>}, {transform_indices = @transform_2, window_bounds = array<i64: 512, 128>}]} {
    %c0_i32 = arith.constant 0 : i32
    %0 = arith.cmpi eq, %arg2, %c0_i32 : i32
    %1 = arith.extui %0 : i1 to i32
    %c0_i32_0 = arith.constant 0 : i32
    %2 = arith.cmpi ne, %1, %c0_i32_0 : i32
    scf.if %2 {
      %cst_10 = arith.constant 0.000000e+00 : f32
      %12 = vector.broadcast %cst_10 : f32 to vector<512x128xf32>
      %c0_11 = arith.constant 0 : index
      %c0_12 = arith.constant 0 : index
      %13 = vector.load %arg6[%c0_11, %c0_12] : memref<512x128xf32, #tpu.memory_space<vmem>>, vector<512x128xf32>
      tpu.vector_store %arg6[%c0_11, %c0_12], %12 {strides = array<i32>} : memref<512x128xf32, #tpu.memory_space<vmem>>, vector<512x128xf32>,
    } else {
    }
    %c0 = arith.constant 0 : index
    %c0_1 = arith.constant 0 : index
    %3 = vector.load %arg6[%c0, %c0_1] : memref<512x128xf32, #tpu.memory_space<vmem>>, vector<512x128xf32>
    %c0_2 = arith.constant 0 : index
    %c0_3 = arith.constant 0 : index
    %4 = vector.load %arg3[%c0_2, %c0_3] : memref<512x128xf32, #tpu.memory_space<vmem>>, vector<512x128xf32>
    %c0_4 = arith.constant 0 : index
    %c0_5 = arith.constant 0 : index
    %5 = vector.load %arg4[%c0_4, %c0_5] : memref<128x128xf32, #tpu.memory_space<vmem>>, vector<128x128xf32>
    %cst = arith.constant dense<0.000000e+00> : vector<512x128xf32>
    %6 = tpu.matmul %4, %5, %cst {dimension_numbers = #tpu.dot_dimension_numbers<[1], [0], [0], [1], [0, 0, 1, 1], [], []>} : vector<512x128xf32>, vector<128x128xf32>, vector<512x128xf32> -> vector<512x128xf32>
    %7 = arith.addf %3, %6 : vector<512x128xf32>
    %c0_6 = arith.constant 0 : index
    %c0_7 = arith.constant 0 : index
    %8 = vector.load %arg6[%c0_6, %c0_7] : memref<512x128xf32, #tpu.memory_space<vmem>>, vector<512x128xf32>
    tpu.vector_store %arg6[%c0_6, %c0_7], %7 {strides = array<i32>} : memref<512x128xf32, #tpu.memory_space<vmem>>, vector<512x128xf32>,
    %c0_i32_8 = arith.constant 0 : i32
    %9 = arith.cmpi eq, %arg2, %c0_i32_8 : i32
    %10 = arith.extui %9 : i1 to i32
    %c0_i32_9 = arith.constant 0 : i32
    %11 = arith.cmpi ne, %10, %c0_i32_9 : i32
    scf.if %11 {
      %c0_10 = arith.constant 0 : index
      %c0_11 = arith.constant 0 : index
      %12 = vector.load %arg6[%c0_10, %c0_11] : memref<512x128xf32, #tpu.memory_space<vmem>>, vector<512x128xf32>
      %c0_12 = arith.constant 0 : index
      %c0_13 = arith.constant 0 : index
      %13 = vector.load %arg5[%c0_12, %c0_13] : memref<512x128xf32, #tpu.memory_space<vmem>>, vector<512x128xf32>
      tpu.vector_store %arg5[%c0_12, %c0_13], %12 {strides = array<i32>} : memref<512x128xf32, #tpu.memory_space<vmem>>, vector<512x128xf32>,
    } else {
    }
    return
  }
  func.func @transform_0(%arg0: i32, %arg1: i32, %arg2: i32) -> (i32, i32) {
    %c0_i32 = arith.constant 0 : i32
    return %arg0, %arg2 : i32, i32
  }
  func.func @transform_1(%arg0: i32, %arg1: i32, %arg2: i32) -> (i32, i32) {
    %c0_i32 = arith.constant 0 : i32
    return %arg2, %arg1 : i32, i32
  }
  func.func @transform_2(%arg0: i32, %arg1: i32, %arg2: i32) -> (i32, i32) {
    %c0_i32 = arith.constant 0 : i32
    return %arg0, %arg1 : i32, i32
  }
}

</mosaic_0001>

<llo_original>
// kernel: custom-call
$region0: #{custom-call}
  %s0 = inlined_call_operand.hbm [shape: c64[2,4,16,16], index: 0, kind: input, shape index: {}]
  %s1 = inlined_call_operand.vmem [shape: f32[2,4,16,16], index: 1, kind: output, shape index: {}]
  $region1: #{custom-call} parent=0
    #allocation0 [shape = 's32[1]{0}', space=sflag, size = 0x4, scoped, tag = 'scoped memory for custom-call']
    %2 = vsyncpa [#allocation0], 0
    %s3 = sshll.u32 %s1, 4
    %s4 = int_to_ptr.vmem [resolvable:$true] %s3
    %6 = dma.hbm_to_vmem [thread:$0]  %s0, 2048, %s4, [#allocation0]
    %7 = dma.done [#allocation0], 2048
    %8 = vsyncpa [#allocation0], 1

// kernel: custom-call.1
$region0: #{custom-call.1}
  %s0 = inlined_call_operand.hbm [shape: c64[2,4,16,16], index: 0, kind: input, shape index: {}]
  %s1 = inlined_call_operand.vmem [shape: f32[2,4,16,16], index: 1, kind: output, shape index: {}]
  %s2 = scalar_lea.hbm %s0, 2048
  $region1: #{custom-call.1} parent=0
    #allocation0 [shape = 's32[1]{0}', space=sflag, size = 0x4, scoped, tag = 'scoped memory for custom-call.1']
    %3 = vsyncpa [#allocation0], 0
    %s4 = sshll.u32 %s1, 4
    %s5 = int_to_ptr.vmem [resolvable:$true] %s4
    %7 = dma.hbm_to_vmem [thread:$0]  %s2, 2048, %s5, [#allocation0]
    %8 = dma.done [#allocation0], 2048
    %9 = vsyncpa [#allocation0], 1

// kernel: custom-call.3
$region0: #{custom-call.3}
  %s0 = inlined_call_operand.hbm [shape: c64[4,4,3,3], index: 0, kind: input, shape index: {}]
  %s1 = inlined_call_operand.vmem [shape: f32[4,4,3,3], index: 1, kind: output, shape index: {}]
  %s2 = scalar_lea.hbm %s0, 576
  $region1: #{custom-call.3} parent=0
    #allocation0 [shape = 's32[1]{0}', space=sflag, size = 0x4, scoped, tag = 'scoped memory for custom-call.3']
    %3 = vsyncpa [#allocation0], 0
    %s4 = sshll.u32 %s1, 4
    %s5 = int_to_ptr.vmem [resolvable:$true] %s4
    %7 = dma.hbm_to_vmem [thread:$0]  %s2, 576, %s5, [#allocation0]
    %8 = dma.done [#allocation0], 576
    %9 = vsyncpa [#allocation0], 1

// kernel: custom-call.2
$region0: #{custom-call.2}
  %s0 = inlined_call_operand.hbm [shape: c64[4,4,3,3], index: 0, kind: input, shape index: {}]
  %s1 = inlined_call_operand.vmem [shape: f32[4,4,3,3], index: 1, kind: output, shape index: {}]
  $region1: #{custom-call.2} parent=0
    #allocation0 [shape = 's32[1]{0}', space=sflag, size = 0x4, scoped, tag = 'scoped memory for custom-call.2']
    %2 = vsyncpa [#allocation0], 0
    %s3 = sshll.u32 %s1, 4
    %s4 = int_to_ptr.vmem [resolvable:$true] %s3
    %6 = dma.hbm_to_vmem [thread:$0]  %s0, 576, %s4, [#allocation0]
    %7 = dma.done [#allocation0], 576
    %8 = vsyncpa [#allocation0], 1

// kernel: custom-call.4
$region0: #{custom-call.4}
  %s0 = inlined_call_operand.vmem [shape: f32[2,4,16,16], index: 0, kind: input, shape index: {}]
  %s1 = inlined_call_operand.vmem [shape: f32[2,4,16,16], index: 1, kind: input, shape index: {}]
  %s2 = inlined_call_operand.hbm [shape: c64[2,4,16,16], index: 2, kind: output, shape index: {}]
  %s3 = scalar_lea.hbm %s2, 2048
  $region1: #{custom-call.4} parent=0
    #allocation0 [shape = 's32[1]{0}', space=sflag, size = 0x4, scoped, tag = 'scoped memory for custom-call.4']
    %4 = vsyncpa [#allocation0], 0
    %s5 = sshll.u32 %s0, 4
    %s6 = int_to_ptr.vmem [resolvable:$true] %s5
    %8 = dma.vmem_to_hbm [thread:$0]  %s6, 2048, %s2, [#allocation0]
    %9 = dma.done [#allocation0], 2048
    %10 = vsyncpa [#allocation0], 1
  $region2: #{custom-call.4} parent=0
    #allocation1 [shape = 's32[1]{0}', space=sflag, size = 0x4, scoped, tag = 'scoped memory for custom-call.4']
    %11 = vsyncpa [#allocation1], 0
    %s12 = sshll.u32 %s1, 4
    %s13 = int_to_ptr.vmem [resolvable:$true] %s12
    %15 = dma.vmem_to_hbm [thread:$0]  %s13, 2048, %s3, [#allocation1]
    %16 = dma.done [#allocation1], 2048
    %17 = vsyncpa [#allocation1], 1

// kernel: slow_complex_conv2d.1
$region0: #{slow_complex_conv2d.1}
  #allocation0 [shape = 'u32[]', space=smem, size = 0x4, offset = 0x4, fixed_abs, tag = 'smem constant byte address 0x4 - core index']
  #allocation1 [shape = 'u32[144,128]{1,0:T(1,128)}', space=vmem, size = 0x12000, scoped, tag = 'internal scratch']
  #allocation2 [shape = 'f32[512,128]{1,0:T(8,128)}', space=vmem, size = 0x40000, scoped, tag = 'scratch operand']
  %s0 = inlined_call_operand.vmem [shape: f32[512,128], index: 0, kind: input, shape index: {}]
  %s1 = inlined_call_operand.vmem [shape: f32[128,128], index: 1, kind: input, shape index: {}]
  %s2 = inlined_call_operand.vmem [shape: f32[512,128], index: 2, kind: output, shape index: {}]
  %s3 = sld [smem:[#allocation0]]
  $region26: #{slow_complex_conv2d.1} parent=0
    _
  %s5 = ssub.s32 1, %s3
  %s6 = scalar_select 0, %s5, %s3
  // Predicated region
  $region2: #{slow_complex_conv2d.1} parent=0 // pred_check
    _
  $region3: #{slow_complex_conv2d.1} parent=0 // pred_check_branch
    %8 = sbr.rel (0) target = $region5
  $region4: #{slow_complex_conv2d.1} parent=0 // pred_region
    _
  $region5: #{slow_complex_conv2d.1} parent=0 // pred_fallthru
    _
  // Predicated region
  $region6: #{slow_complex_conv2d.1} parent=0 // pred_check
    _
  $region7: #{slow_complex_conv2d.1} parent=0 // pred_check_branch
    %10 = sbr.rel (0) target = $region9
  $region8: #{slow_complex_conv2d.1} parent=0 // pred_region
    _
  $region9: #{slow_complex_conv2d.1} parent=0 // pred_fallthru
    _
  %p11 = scmp.eq.s32.totalorder 0, 0
  // Predicated region
  $region10: #{slow_complex_conv2d.1} parent=0 // pred_check
    %p12 = pneg %p11
  $region11: #{slow_complex_conv2d.1} parent=0 // pred_check_branch
    %14 = sbr.rel (%p12) target = $region13
  $region12: #{slow_complex_conv2d.1} parent=0 // pred_region
    %15 = vst [vmem:[#allocation2] sm:$0xff] 0.0
    %16 = vst [vmem:[#allocation2 + $0x8] sm:$0xff] 0.0
    %17 = vst [vmem:[#allocation2 + $0x10] sm:$0xff] 0.0
    %18 = vst [vmem:[#allocation2 + $0x18] sm:$0xff] 0.0
    %19 = vst [vmem:[#allocation2 + $0x20] sm:$0xff] 0.0
    %20 = vst [vmem:[#allocation2 + $0x28] sm:$0xff] 0.0
    %21 = vst [vmem:[#allocation2 + $0x30] sm:$0xff] 0.0
    %22 = vst [vmem:[#allocation2 + $0x38] sm:$0xff] 0.0
    %23 = vst [vmem:[#allocation2 + $0x40] sm:$0xff] 0.0
    %24 = vst [vmem:[#allocation2 + $0x48] sm:$0xff] 0.0
    %25 = vst [vmem:[#allocation2 + $0x50] sm:$0xff] 0.0
    %26 = vst [vmem:[#allocation2 + $0x58] sm:$0xff] 0.0
    %27 = vst [vmem:[#allocation2 + $0x60] sm:$0xff] 0.0
    %28 = vst [vmem:[#allocation2 + $0x68] sm:$0xff] 0.0
    %29 = vst [vmem:[#allocation2 + $0x70] sm:$0xff] 0.0
    %30 = vst [vmem:[#allocation2 + $0x78] sm:$0xff] 0.0
    %31 = vst [vmem:[#allocation2 + $0x80] sm:$0xff] 0.0
    %32 = vst [vmem:[#allocation2 + $0x88] sm:$0xff] 0.0
    %33 = vst [vmem:[#allocation2 + $0x90] sm:$0xff] 0.0
    %34 = vst [vmem:[#allocation2 + $0x98] sm:$0xff] 0.0
    %35 = vst [vmem:[#allocation2 + $0xa0] sm:$0xff] 0.0
    %36 = vst [vmem:[#allocation2 + $0xa8] sm:$0xff] 0.0
    %37 = vst [vmem:[#allocation2 + $0xb0] sm:$0xff] 0.0
    %38 = vst [vmem:[#allocation2 + $0xb8] sm:$0xff] 0.0
    %39 = vst [vmem:[#allocation2 + $0xc0] sm:$0xff] 0.0
    %40 = vst [vmem:[#allocation2 + $0xc8] sm:$0xff] 0.0
    %41 = vst [vmem:[#allocation2 + $0xd0] sm:$0xff] 0.0
    %42 = vst [vmem:[#allocation2 + $0xd8] sm:$0xff] 0.0
    %43 = vst [vmem:[#allocation2 + $0xe0] sm:$0xff] 0.0
    %44 = vst [vmem:[#allocation2 + $0xe8] sm:$0xff] 0.0
    %45 = vst [vmem:[#allocation2 + $0xf0] sm:$0xff] 0.0
    %46 = vst [vmem:[#allocation2 + $0xf8] sm:$0xff] 0.0
    %47 = vst [vmem:[#allocation2 + $0x100] sm:$0xff] 0.0
    %48 = vst [vmem:[#allocation2 + $0x108] sm:$0xff] 0.0
    %49 = vst [vmem:[#allocation2 + $0x110] sm:$0xff] 0.0
    %50 = vst [vmem:[#allocation2 + $0x118] sm:$0xff] 0.0
    %51 = vst [vmem:[#allocation2 + $0x120] sm:$0xff] 0.0
    %52 = vst [vmem:[#allocation2 + $0x128] sm:$0xff] 0.0
    %53 = vst [vmem:[#allocation2 + $0x130] sm:$0xff] 0.0
    %54 = vst [vmem:[#allocation2 + $0x138] sm:$0xff] 0.0
    %55 = vst [vmem:[#allocation2 + $0x140] sm:$0xff] 0.0
    %56 = vst [vmem:[#allocation2 + $0x148] sm:$0xff] 0.0
    %57 = vst [vmem:[#allocation2 + $0x150] sm:$0xff] 0.0
    %58 = vst [vmem:[#allocation2 + $0x158] sm:$0xff] 0.0
    %59 = vst [vmem:[#allocation2 + $0x160] sm:$0xff] 0.0
    %60 = vst [vmem:[#allocation2 + $0x168] sm:$0xff] 0.0
    %61 = vst [vmem:[#allocation2 + $0x170] sm:$0xff] 0.0
    %62 = vst [vmem:[#allocation2 + $0x178] sm:$0xff] 0.0
    %63 = vst [vmem:[#allocation2 + $0x180] sm:$0xff] 0.0
    %64 = vst [vmem:[#allocation2 + $0x188] sm:$0xff] 0.0
    %65 = vst [vmem:[#allocation2 + $0x190] sm:$0xff] 0.0
    %66 = vst [vmem:[#allocation2 + $0x198] sm:$0xff] 0.0
    %67 = vst [vmem:[#allocation2 + $0x1a0] sm:$0xff] 0.0
    %68 = vst [vmem:[#allocation2 + $0x1a8] sm:$0xff] 0.0
    %69 = vst [vmem:[#allocation2 + $0x1b0] sm:$0xff] 0.0
    %70 = vst [vmem:[#allocation2 + $0x1b8] sm:$0xff] 0.0
    %71 = vst [vmem:[#allocation2 + $0x1c0] sm:$0xff] 0.0
    %72 = vst [vmem:[#allocation2 + $0x1c8] sm:$0xff] 0.0
    %73 = vst [vmem:[#allocation2 + $0x1d0] sm:$0xff] 0.0
    %74 = vst [vmem:[#allocation2 + $0x1d8] sm:$0xff] 0.0
    %75 = vst [vmem:[#allocation2 + $0x1e0] sm:$0xff] 0.0
    %76 = vst [vmem:[#allocation2 + $0x1e8] sm:$0xff] 0.0
    %77 = vst [vmem:[#allocation2 + $0x1f0] sm:$0xff] 0.0
    %78 = vst [vmem:[#allocation2 + $0x1f8] sm:$0xff] 0.0
  $region13: #{slow_complex_conv2d.1} parent=0 // pred_fallthru
    _
  %v79 = vld [vmem:[#allocation2] sm:$0xff]
  %v80 = vld [vmem:[#allocation2 + $0x8] sm:$0xff]
  %v81 = vld [vmem:[#allocation2 + $0x10] sm:$0xff]
  %v82 = vld [vmem:[#allocation2 + $0x18] sm:$0xff]
  %v83 = vld [vmem:[#allocation2 + $0x20] sm:$0xff]
  %v84 = vld [vmem:[#allocation2 + $0x28] sm:$0xff]
  %v85 = vld [vmem:[#allocation2 + $0x30] sm:$0xff]
  %v86 = vld [vmem:[#allocation2 + $0x38] sm:$0xff]
  %v87 = vld [vmem:[#allocation2 + $0x40] sm:$0xff]
  %v88 = vld [vmem:[#allocation2 + $0x48] sm:$0xff]
  %v89 = vld [vmem:[#allocation2 + $0x50] sm:$0xff]
  %v90 = vld [vmem:[#allocation2 + $0x58] sm:$0xff]
  %v91 = vld [vmem:[#allocation2 + $0x60] sm:$0xff]
  %v92 = vld [vmem:[#allocation2 + $0x68] sm:$0xff]
  %v93 = vld [vmem:[#allocation2 + $0x70] sm:$0xff]
  %v94 = vld [vmem:[#allocation2 + $0x78] sm:$0xff]
  %v95 = vld [vmem:[#allocation2 + $0x80] sm:$0xff]
  %v96 = vld [vmem:[#allocation2 + $0x88] sm:$0xff]
  %v97 = vld [vmem:[#allocation2 + $0x90] sm:$0xff]
  %v98 = vld [vmem:[#allocation2 + $0x98] sm:$0xff]
  %v99 = vld [vmem:[#allocation2 + $0xa0] sm:$0xff]
  %v100 = vld [vmem:[#allocation2 + $0xa8] sm:$0xff]
  %v101 = vld [vmem:[#allocation2 + $0xb0] sm:$0xff]
  %v102 = vld [vmem:[#allocation2 + $0xb8] sm:$0xff]
  %v103 = vld [vmem:[#allocation2 + $0xc0] sm:$0xff]
  %v104 = vld [vmem:[#allocation2 + $0xc8] sm:$0xff]
  %v105 = vld [vmem:[#allocation2 + $0xd0] sm:$0xff]
  %v106 = vld [vmem:[#allocation2 + $0xd8] sm:$0xff]
  %v107 = vld [vmem:[#allocation2 + $0xe0] sm:$0xff]
  %v108 = vld [vmem:[#allocation2 + $0xe8] sm:$0xff]
  %v109 = vld [vmem:[#allocation2 + $0xf0] sm:$0xff]
  %v110 = vld [vmem:[#allocation2 + $0xf8] sm:$0xff]
  %v111 = vld [vmem:[#allocation2 + $0x100] sm:$0xff]
  %v112 = vld [vmem:[#allocation2 + $0x108] sm:$0xff]
  %v113 = vld [vmem:[#allocation2 + $0x110] sm:$0xff]
  %v114 = vld [vmem:[#allocation2 + $0x118] sm:$0xff]
  %v115 = vld [vmem:[#allocation2 + $0x120] sm:$0xff]
  %v116 = vld [vmem:[#allocation2 + $0x128] sm:$0xff]
  %v117 = vld [vmem:[#allocation2 + $0x130] sm:$0xff]
  %v118 = vld [vmem:[#allocation2 + $0x138] sm:$0xff]
  %v119 = vld [vmem:[#allocation2 + $0x140] sm:$0xff]
  %v120 = vld [vmem:[#allocation2 + $0x148] sm:$0xff]
  %v121 = vld [vmem:[#allocation2 + $0x150] sm:$0xff]
  %v122 = vld [vmem:[#allocation2 + $0x158] sm:$0xff]
  %v123 = vld [vmem:[#allocation2 + $0x160] sm:$0xff]
  %v124 = vld [vmem:[#allocation2 + $0x168] sm:$0xff]
  %v125 = vld [vmem:[#allocation2 + $0x170] sm:$0xff]
  %v126 = vld [vmem:[#allocation2 + $0x178] sm:$0xff]
  %v127 = vld [vmem:[#allocation2 + $0x180] sm:$0xff]
  %v128 = vld [vmem:[#allocation2 + $0x188] sm:$0xff]
  %v129 = vld [vmem:[#allocation2 + $0x190] sm:$0xff]
  %v130 = vld [vmem:[#allocation2 + $0x198] sm:$0xff]
  %v131 = vld [vmem:[#allocation2 + $0x1a0] sm:$0xff]
  %v132 = vld [vmem:[#allocation2 + $0x1a8] sm:$0xff]
  %v133 = vld [vmem:[#allocation2 + $0x1b0] sm:$0xff]
  %v134 = vld [vmem:[#allocation2 + $0x1b8] sm:$0xff]
  %v135 = vld [vmem:[#allocation2 + $0x1c0] sm:$0xff]
  %v136 = vld [vmem:[#allocation2 + $0x1c8] sm:$0xff]
  %v137 = vld [vmem:[#allocation2 + $0x1d0] sm:$0xff]
  %v138 = vld [vmem:[#allocation2 + $0x1d8] sm:$0xff]
  %v139 = vld [vmem:[#allocation2 + $0x1e0] sm:$0xff]
  %v140 = vld [vmem:[#allocation2 + $0x1e8] sm:$0xff]
  %v141 = vld [vmem:[#allocation2 + $0x1f0] sm:$0xff]
  %v142 = vld [vmem:[#allocation2 + $0x1f8] sm:$0xff]
  %v143 = vld [vmem:[%s0] sm:$0xff]
  %v144 = vld [vmem:[%s0 + $0x8] sm:$0xff]
  %v145 = vld [vmem:[%s0 + $0x10] sm:$0xff]
  %v146 = vld [vmem:[%s0 + $0x18] sm:$0xff]
  %v147 = vld [vmem:[%s0 + $0x20] sm:$0xff]
  %v148 = vld [vmem:[%s0 + $0x28] sm:$0xff]
  %v149 = vld [vmem:[%s0 + $0x30] sm:$0xff]
  %v150 = vld [vmem:[%s0 + $0x38] sm:$0xff]
  %v151 = vld [vmem:[%s0 + $0x40] sm:$0xff]
  %v152 = vld [vmem:[%s0 + $0x48] sm:$0xff]
  %v153 = vld [vmem:[%s0 + $0x50] sm:$0xff]
  %v154 = vld [vmem:[%s0 + $0x58] sm:$0xff]
  %v155 = vld [vmem:[%s0 + $0x60] sm:$0xff]
  %v156 = vld [vmem:[%s0 + $0x68] sm:$0xff]
  %v157 = vld [vmem:[%s0 + $0x70] sm:$0xff]
  %v158 = vld [vmem:[%s0 + $0x78] sm:$0xff]
  %v159 = vld [vmem:[%s0 + $0x80] sm:$0xff]
  %v160 = vld [vmem:[%s0 + $0x88] sm:$0xff]
  %v161 = vld [vmem:[%s0 + $0x90] sm:$0xff]
  %v162 = vld [vmem:[%s0 + $0x98] sm:$0xff]
  %v163 = vld [vmem:[%s0 + $0xa0] sm:$0xff]
  %v164 = vld [vmem:[%s0 + $0xa8] sm:$0xff]
  %v165 = vld [vmem:[%s0 + $0xb0] sm:$0xff]
  %v166 = vld [vmem:[%s0 + $0xb8] sm:$0xff]
  %v167 = vld [vmem:[%s0 + $0xc0] sm:$0xff]
  %v168 = vld [vmem:[%s0 + $0xc8] sm:$0xff]
  %v169 = vld [vmem:[%s0 + $0xd0] sm:$0xff]
  %v170 = vld [vmem:[%s0 + $0xd8] sm:$0xff]
  %v171 = vld [vmem:[%s0 + $0xe0] sm:$0xff]
  %v172 = vld [vmem:[%s0 + $0xe8] sm:$0xff]
  %v173 = vld [vmem:[%s0 + $0xf0] sm:$0xff]
  %v174 = vld [vmem:[%s0 + $0xf8] sm:$0xff]
  %v175 = vld [vmem:[%s0 + $0x100] sm:$0xff]
  %v176 = vld [vmem:[%s0 + $0x108] sm:$0xff]
  %v177 = vld [vmem:[%s0 + $0x110] sm:$0xff]
  %v178 = vld [vmem:[%s0 + $0x118] sm:$0xff]
  %v179 = vld [vmem:[%s0 + $0x120] sm:$0xff]
  %v180 = vld [vmem:[%s0 + $0x128] sm:$0xff]
  %v181 = vld [vmem:[%s0 + $0x130] sm:$0xff]
  %v182 = vld [vmem:[%s0 + $0x138] sm:$0xff]
  %v183 = vld [vmem:[%s0 + $0x140] sm:$0xff]
  %v184 = vld [vmem:[%s0 + $0x148] sm:$0xff]
  %v185 = vld [vmem:[%s0 + $0x150] sm:$0xff]
  %v186 = vld [vmem:[%s0 + $0x158] sm:$0xff]
  %v187 = vld [vmem:[%s0 + $0x160] sm:$0xff]
  %v188 = vld [vmem:[%s0 + $0x168] sm:$0xff]
  %v189 = vld [vmem:[%s0 + $0x170] sm:$0xff]
  %v190 = vld [vmem:[%s0 + $0x178] sm:$0xff]
  %v191 = vld [vmem:[%s0 + $0x180] sm:$0xff]
  %v192 = vld [vmem:[%s0 + $0x188] sm:$0xff]
  %v193 = vld [vmem:[%s0 + $0x190] sm:$0xff]
  %v194 = vld [vmem:[%s0 + $0x198] sm:$0xff]
  %v195 = vld [vmem:[%s0 + $0x1a0] sm:$0xff]
  %v196 = vld [vmem:[%s0 + $0x1a8] sm:$0xff]
  %v197 = vld [vmem:[%s0 + $0x1b0] sm:$0xff]
  %v198 = vld [vmem:[%s0 + $0x1b8] sm:$0xff]
  %v199 = vld [vmem:[%s0 + $0x1c0] sm:$0xff]
  %v200 = vld [vmem:[%s0 + $0x1c8] sm:$0xff]
  %v201 = vld [vmem:[%s0 + $0x1d0] sm:$0xff]
  %v202 = vld [vmem:[%s0 + $0x1d8] sm:$0xff]
  %v203 = vld [vmem:[%s0 + $0x1e0] sm:$0xff]
  %v204 = vld [vmem:[%s0 + $0x1e8] sm:$0xff]
  %v205 = vld [vmem:[%s0 + $0x1f0] sm:$0xff]
  %v206 = vld [vmem:[%s0 + $0x1f8] sm:$0xff]
  %v207 = vld [vmem:[%s1] sm:$0xff]
  %v208 = vld [vmem:[%s1 + $0x8] sm:$0xff]
  %v209 = vld [vmem:[%s1 + $0x10] sm:$0xff]
  %v210 = vld [vmem:[%s1 + $0x18] sm:$0xff]
  %v211 = vld [vmem:[%s1 + $0x20] sm:$0xff]
  %v212 = vld [vmem:[%s1 + $0x28] sm:$0xff]
  %v213 = vld [vmem:[%s1 + $0x30] sm:$0xff]
  %v214 = vld [vmem:[%s1 + $0x38] sm:$0xff]
  %v215 = vld [vmem:[%s1 + $0x40] sm:$0xff]
  %v216 = vld [vmem:[%s1 + $0x48] sm:$0xff]
  %v217 = vld [vmem:[%s1 + $0x50] sm:$0xff]
  %v218 = vld [vmem:[%s1 + $0x58] sm:$0xff]
  %v219 = vld [vmem:[%s1 + $0x60] sm:$0xff]
  %v220 = vld [vmem:[%s1 + $0x68] sm:$0xff]
  %v221 = vld [vmem:[%s1 + $0x70] sm:$0xff]
  %v222 = vld [vmem:[%s1 + $0x78] sm:$0xff]
  %223 = vmatprep.subr.mxu0 0.0
  %224 = vmatpush1.msra.mxu0 %v222
  %225 = vmatprep.subr.mxu0 0.0
  %226 = vmatpush1.msra.mxu0 %v221
  %227 = vmatprep.subr.mxu0 0.0
  %228 = vmatpush1.msra.mxu0 %v220
  %229 = vmatprep.subr.mxu0 0.0
  %230 = vmatpush1.msra.mxu0 %v219
  %231 = vmatprep.subr.mxu0 0.0
  %232 = vmatpush1.msra.mxu0 %v218
  %233 = vmatprep.subr.mxu0 0.0
  %234 = vmatpush1.msra.mxu0 %v217
  %235 = vmatprep.subr.mxu0 0.0
  %236 = vmatpush1.msra.mxu0 %v216
  %237 = vmatprep.subr.mxu0 0.0
  %238 = vmatpush1.msra.mxu0 %v215
  %239 = vmatprep.subr.mxu0 0.0
  %240 = vmatpush1.msra.mxu0 %v214
  %241 = vmatprep.subr.mxu0 0.0
  %242 = vmatpush1.msra.mxu0 %v213
  %243 = vmatprep.subr.mxu0 0.0
  %244 = vmatpush1.msra.mxu0 %v212
  %245 = vmatprep.subr.mxu0 0.0
  %246 = vmatpush1.msra.mxu0 %v211
  %247 = vmatprep.subr.mxu0 0.0
  %248 = vmatpush1.msra.mxu0 %v210
  %249 = vmatprep.subr.mxu0 0.0
  %250 = vmatpush1.msra.mxu0 %v209
  %251 = vmatprep.subr.mxu0 0.0
  %252 = vmatpush1.msra.mxu0 %v208
  %253 = vmatprep.subr.mxu0 0.0
  %254 = vmatpush1.msra.mxu0 %v207
  %255 = vmatprep.subr.mxu0 0.0
  %256 = vmatpush2.msra.mxu0 0.0
  %257 = vmatprep.subr.mxu0 0.0
  %258 = vmatpush2.msra.mxu0 0.0
  %259 = vmatprep.subr.mxu0 0.0
  %260 = vmatpush2.msra.mxu0 0.0
  %261 = vmatprep.subr.mxu0 0.0
  %262 = vmatpush2.msra.mxu0 0.0
  %263 = vmatprep.subr.mxu0 0.0
  %264 = vmatpush2.msra.mxu0 0.0
  %265 = vmatprep.subr.mxu0 0.0
  %266 = vmatpush2.msra.mxu0 0.0
  %267 = vmatprep.subr.mxu0 0.0
  %268 = vmatpush2.msra.mxu0 0.0
  %269 = vmatprep.subr.mxu0 0.0
  %270 = vmatpush2.msra.mxu0 0.0
  %271 = vmatprep.subr.mxu0 0.0
  %272 = vmatpush2.msra.mxu0 0.0
  %273 = vmatprep.subr.mxu0 0.0
  %274 = vmatpush2.msra.mxu0 0.0
  %275 = vmatprep.subr.mxu0 0.0
  %276 = vmatpush2.msra.mxu0 0.0
  %277 = vmatprep.subr.mxu0 0.0
  %278 = vmatpush2.msra.mxu0 0.0
  %279 = vmatprep.subr.mxu0 0.0
  %280 = vmatpush2.msra.mxu0 0.0
  %281 = vmatprep.subr.mxu0 0.0
  %282 = vmatpush2.msra.mxu0 0.0
  %283 = vmatprep.subr.mxu0 0.0
  %284 = vmatpush2.msra.mxu0 0.0
  %285 = vmatprep.subr.mxu0 0.0
  %286 = vmatpush2.msra.mxu0 0.0
  %287 = vmatprep.mubr.f32.mxu0 0.0
  %288 = vmatmul.mubr.f32.gmra.mxu0 %v143
  %v289 = vpop.f32.mrf.mxu0
  %v290 = vadd.f32 0.0, %v289
  %v291 = vpop.f32.mrf.mxu0
  %292 = vmatprep.mubr.f32.mxu0 0.0
  %293 = vmatmul.mubr.f32.gmra.mxu0 %v144
  %v294 = vpop.f32.mrf.mxu0
  %v295 = vadd.f32 0.0, %v294
  %v296 = vpop.f32.mrf.mxu0
  %297 = vmatprep.mubr.f32.mxu0 0.0
  %298 = vmatmul.mubr.f32.gmra.mxu0 %v145
  %v299 = vpop.f32.mrf.mxu0
  %v300 = vadd.f32 0.0, %v299
  %v301 = vpop.f32.mrf.mxu0
  %302 = vmatprep.mubr.f32.mxu0 0.0
  %303 = vmatmul.mubr.f32.gmra.mxu0 %v146
  %v304 = vpop.f32.mrf.mxu0
  %v305 = vadd.f32 0.0, %v304
  %v306 = vpop.f32.mrf.mxu0
  %307 = vmatprep.mubr.f32.mxu0 0.0
  %308 = vmatmul.mubr.f32.gmra.mxu0 %v147
  %v309 = vpop.f32.mrf.mxu0
  %v310 = vadd.f32 0.0, %v309
  %v311 = vpop.f32.mrf.mxu0
  %312 = vmatprep.mubr.f32.mxu0 0.0
  %313 = vmatmul.mubr.f32.gmra.mxu0 %v148
  %v314 = vpop.f32.mrf.mxu0
  %v315 = vadd.f32 0.0, %v314
  %v316 = vpop.f32.mrf.mxu0
  %317 = vmatprep.mubr.f32.mxu0 0.0
  %318 = vmatmul.mubr.f32.gmra.mxu0 %v149
  %v319 = vpop.f32.mrf.mxu0
  %v320 = vadd.f32 0.0, %v319
  %v321 = vpop.f32.mrf.mxu0
  %322 = vmatprep.mubr.f32.mxu0 0.0
  %323 = vmatmul.mubr.f32.gmra.mxu0 %v150
  %v324 = vpop.f32.mrf.mxu0
  %v325 = vadd.f32 0.0, %v324
  %v326 = vpop.f32.mrf.mxu0
  %327 = vmatprep.mubr.f32.mxu0 0.0
  %328 = vmatmul.mubr.f32.gmra.mxu0 %v151
  %v329 = vpop.f32.mrf.mxu0
  %v330 = vadd.f32 0.0, %v329
  %v331 = vpop.f32.mrf.mxu0
  %332 = vmatprep.mubr.f32.mxu0 0.0
  %333 = vmatmul.mubr.f32.gmra.mxu0 %v152
  %v334 = vpop.f32.mrf.mxu0
  %v335 = vadd.f32 0.0, %v334
  %v336 = vpop.f32.mrf.mxu0
  %337 = vmatprep.mubr.f32.mxu0 0.0
  %338 = vmatmul.mubr.f32.gmra.mxu0 %v153
  %v339 = vpop.f32.mrf.mxu0
  %v340 = vadd.f32 0.0, %v339
  %v341 = vpop.f32.mrf.mxu0
  %342 = vmatprep.mubr.f32.mxu0 0.0
  %343 = vmatmul.mubr.f32.gmra.mxu0 %v154
  %v344 = vpop.f32.mrf.mxu0
  %v345 = vadd.f32 0.0, %v344
  %v346 = vpop.f32.mrf.mxu0
  %347 = vmatprep.mubr.f32.mxu0 0.0
  %348 = vmatmul.mubr.f32.gmra.mxu0 %v155
  %v349 = vpop.f32.mrf.mxu0
  %v350 = vadd.f32 0.0, %v349
  %v351 = vpop.f32.mrf.mxu0
  %352 = vmatprep.mubr.f32.mxu0 0.0
  %353 = vmatmul.mubr.f32.gmra.mxu0 %v156
  %v354 = vpop.f32.mrf.mxu0
  %v355 = vadd.f32 0.0, %v354
  %v356 = vpop.f32.mrf.mxu0
  %357 = vmatprep.mubr.f32.mxu0 0.0
  %358 = vmatmul.mubr.f32.gmra.mxu0 %v157
  %v359 = vpop.f32.mrf.mxu0
  %v360 = vadd.f32 0.0, %v359
  %v361 = vpop.f32.mrf.mxu0
  %362 = vmatprep.mubr.f32.mxu0 0.0
  %363 = vmatmul.mubr.f32.gmra.mxu0 %v158
  %v364 = vpop.f32.mrf.mxu0
  %v365 = vadd.f32 0.0, %v364
  %v366 = vpop.f32.mrf.mxu0
  %367 = vmatprep.mubr.f32.mxu0 0.0
  %368 = vmatmul.mubr.f32.gmra.mxu0 %v159
  %v369 = vpop.f32.mrf.mxu0
  %v370 = vadd.f32 0.0, %v369
  %v371 = vpop.f32.mrf.mxu0
  %372 = vmatprep.mubr.f32.mxu0 0.0
  %373 = vmatmul.mubr.f32.gmra.mxu0 %v160
  %v374 = vpop.f32.mrf.mxu0
  %v375 = vadd.f32 0.0, %v374
  %v376 = vpop.f32.mrf.mxu0
  %377 = vmatprep.mubr.f32.mxu0 0.0
  %378 = vmatmul.mubr.f32.gmra.mxu0 %v161
  %v379 = vpop.f32.mrf.mxu0
  %v380 = vadd.f32 0.0, %v379
  %v381 = vpop.f32.mrf.mxu0
  %382 = vmatprep.mubr.f32.mxu0 0.0
  %383 = vmatmul.mubr.f32.gmra.mxu0 %v162
  %v384 = vpop.f32.mrf.mxu0
  %v385 = vadd.f32 0.0, %v384
  %v386 = vpop.f32.mrf.mxu0
  %387 = vmatprep.mubr.f32.mxu0 0.0
  %388 = vmatmul.mubr.f32.gmra.mxu0 %v163
  %v389 = vpop.f32.mrf.mxu0
  %v390 = vadd.f32 0.0, %v389
  %v391 = vpop.f32.mrf.mxu0
  %392 = vmatprep.mubr.f32.mxu0 0.0
  %393 = vmatmul.mubr.f32.gmra.mxu0 %v164
  %v394 = vpop.f32.mrf.mxu0
  %v395 = vadd.f32 0.0, %v394
  %v396 = vpop.f32.mrf.mxu0
  %397 = vmatprep.mubr.f32.mxu0 0.0
  %398 = vmatmul.mubr.f32.gmra.mxu0 %v165
  %v399 = vpop.f32.mrf.mxu0
  %v400 = vadd.f32 0.0, %v399
  %v401 = vpop.f32.mrf.mxu0
  %402 = vmatprep.mubr.f32.mxu0 0.0
  %403 = vmatmul.mubr.f32.gmra.mxu0 %v166
  %v404 = vpop.f32.mrf.mxu0
  %v405 = vadd.f32 0.0, %v404
  %v406 = vpop.f32.mrf.mxu0
  %407 = vmatprep.mubr.f32.mxu0 0.0
  %408 = vmatmul.mubr.f32.gmra.mxu0 %v167
  %v409 = vpop.f32.mrf.mxu0
  %v410 = vadd.f32 0.0, %v409
  %v411 = vpop.f32.mrf.mxu0
  %412 = vmatprep.mubr.f32.mxu0 0.0
  %413 = vmatmul.mubr.f32.gmra.mxu0 %v168
  %v414 = vpop.f32.mrf.mxu0
  %v415 = vadd.f32 0.0, %v414
  %v416 = vpop.f32.mrf.mxu0
  %417 = vmatprep.mubr.f32.mxu0 0.0
  %418 = vmatmul.mubr.f32.gmra.mxu0 %v169
  %v419 = vpop.f32.mrf.mxu0
  %v420 = vadd.f32 0.0, %v419
  %v421 = vpop.f32.mrf.mxu0
  %422 = vmatprep.mubr.f32.mxu0 0.0
  %423 = vmatmul.mubr.f32.gmra.mxu0 %v170
  %v424 = vpop.f32.mrf.mxu0
  %v425 = vadd.f32 0.0, %v424
  %v426 = vpop.f32.mrf.mxu0
  %427 = vmatprep.mubr.f32.mxu0 0.0
  %428 = vmatmul.mubr.f32.gmra.mxu0 %v171
  %v429 = vpop.f32.mrf.mxu0
  %v430 = vadd.f32 0.0, %v429
  %v431 = vpop.f32.mrf.mxu0
  %432 = vmatprep.mubr.f32.mxu0 0.0
  %433 = vmatmul.mubr.f32.gmra.mxu0 %v172
  %v434 = vpop.f32.mrf.mxu0
  %v435 = vadd.f32 0.0, %v434
  %v436 = vpop.f32.mrf.mxu0
  %437 = vmatprep.mubr.f32.mxu0 0.0
  %438 = vmatmul.mubr.f32.gmra.mxu0 %v173
  %v439 = vpop.f32.mrf.mxu0
  %v440 = vadd.f32 0.0, %v439
  %v441 = vpop.f32.mrf.mxu0
  %442 = vmatprep.mubr.f32.mxu0 0.0
  %443 = vmatmul.mubr.f32.gmra.mxu0 %v174
  %v444 = vpop.f32.mrf.mxu0
  %v445 = vadd.f32 0.0, %v444
  %v446 = vpop.f32.mrf.mxu0
  %447 = vmatprep.mubr.f32.mxu0 0.0
  %448 = vmatmul.mubr.f32.gmra.mxu0 %v175
  %v449 = vpop.f32.mrf.mxu0
  %v450 = vadd.f32 0.0, %v449
  %v451 = vpop.f32.mrf.mxu0
  %452 = vmatprep.mubr.f32.mxu0 0.0
  %453 = vmatmul.mubr.f32.gmra.mxu0 %v176
  %v454 = vpop.f32.mrf.mxu0
  %v455 = vadd.f32 0.0, %v454
  %v456 = vpop.f32.mrf.mxu0
  %457 = vmatprep.mubr.f32.mxu0 0.0
  %458 = vmatmul.mubr.f32.gmra.mxu0 %v177
  %v459 = vpop.f32.mrf.mxu0
  %v460 = vadd.f32 0.0, %v459
  %v461 = vpop.f32.mrf.mxu0
  %462 = vmatprep.mubr.f32.mxu0 0.0
  %463 = vmatmul.mubr.f32.gmra.mxu0 %v178
  %v464 = vpop.f32.mrf.mxu0
  %v465 = vadd.f32 0.0, %v464
  %v466 = vpop.f32.mrf.mxu0
  %467 = vmatprep.mubr.f32.mxu0 0.0
  %468 = vmatmul.mubr.f32.gmra.mxu0 %v179
  %v469 = vpop.f32.mrf.mxu0
  %v470 = vadd.f32 0.0, %v469
  %v471 = vpop.f32.mrf.mxu0
  %472 = vmatprep.mubr.f32.mxu0 0.0
  %473 = vmatmul.mubr.f32.gmra.mxu0 %v180
  %v474 = vpop.f32.mrf.mxu0
  %v475 = vadd.f32 0.0, %v474
  %v476 = vpop.f32.mrf.mxu0
  %477 = vmatprep.mubr.f32.mxu0 0.0
  %478 = vmatmul.mubr.f32.gmra.mxu0 %v181
  %v479 = vpop.f32.mrf.mxu0
  %v480 = vadd.f32 0.0, %v479
  %v481 = vpop.f32.mrf.mxu0
  %482 = vmatprep.mubr.f32.mxu0 0.0
  %483 = vmatmul.mubr.f32.gmra.mxu0 %v182
  %v484 = vpop.f32.mrf.mxu0
  %v485 = vadd.f32 0.0, %v484
  %v486 = vpop.f32.mrf.mxu0
  %487 = vmatprep.mubr.f32.mxu0 0.0
  %488 = vmatmul.mubr.f32.gmra.mxu0 %v183
  %v489 = vpop.f32.mrf.mxu0
  %v490 = vadd.f32 0.0, %v489
  %v491 = vpop.f32.mrf.mxu0
  %492 = vmatprep.mubr.f32.mxu0 0.0
  %493 = vmatmul.mubr.f32.gmra.mxu0 %v184
  %v494 = vpop.f32.mrf.mxu0
  %v495 = vadd.f32 0.0, %v494
  %v496 = vpop.f32.mrf.mxu0
  %497 = vmatprep.mubr.f32.mxu0 0.0
  %498 = vmatmul.mubr.f32.gmra.mxu0 %v185
  %v499 = vpop.f32.mrf.mxu0
  %v500 = vadd.f32 0.0, %v499
  %v501 = vpop.f32.mrf.mxu0
  %502 = vmatprep.mubr.f32.mxu0 0.0
  %503 = vmatmul.mubr.f32.gmra.mxu0 %v186
  %v504 = vpop.f32.mrf.mxu0
  %v505 = vadd.f32 0.0, %v504
  %v506 = vpop.f32.mrf.mxu0
  %507 = vmatprep.mubr.f32.mxu0 0.0
  %508 = vmatmul.mubr.f32.gmra.mxu0 %v187
  %v509 = vpop.f32.mrf.mxu0
  %v510 = vadd.f32 0.0, %v509
  %v511 = vpop.f32.mrf.mxu0
  %512 = vmatprep.mubr.f32.mxu0 0.0
  %513 = vmatmul.mubr.f32.gmra.mxu0 %v188
  %v514 = vpop.f32.mrf.mxu0
  %v515 = vadd.f32 0.0, %v514
  %v516 = vpop.f32.mrf.mxu0
  %517 = vmatprep.mubr.f32.mxu0 0.0
  %518 = vmatmul.mubr.f32.gmra.mxu0 %v189
  %v519 = vpop.f32.mrf.mxu0
  %v520 = vadd.f32 0.0, %v519
  %v521 = vpop.f32.mrf.mxu0
  %522 = vmatprep.mubr.f32.mxu0 0.0
  %523 = vmatmul.mubr.f32.gmra.mxu0 %v190
  %v524 = vpop.f32.mrf.mxu0
  %v525 = vadd.f32 0.0, %v524
  %v526 = vpop.f32.mrf.mxu0
  %527 = vmatprep.mubr.f32.mxu0 0.0
  %528 = vmatmul.mubr.f32.gmra.mxu0 %v191
  %v529 = vpop.f32.mrf.mxu0
  %v530 = vadd.f32 0.0, %v529
  %v531 = vpop.f32.mrf.mxu0
  %532 = vmatprep.mubr.f32.mxu0 0.0
  %533 = vmatmul.mubr.f32.gmra.mxu0 %v192
  %v534 = vpop.f32.mrf.mxu0
  %v535 = vadd.f32 0.0, %v534
  %v536 = vpop.f32.mrf.mxu0
  %537 = vmatprep.mubr.f32.mxu0 0.0
  %538 = vmatmul.mubr.f32.gmra.mxu0 %v193
  %v539 = vpop.f32.mrf.mxu0
  %v540 = vadd.f32 0.0, %v539
  %v541 = vpop.f32.mrf.mxu0
  %542 = vmatprep.mubr.f32.mxu0 0.0
  %543 = vmatmul.mubr.f32.gmra.mxu0 %v194
  %v544 = vpop.f32.mrf.mxu0
  %v545 = vadd.f32 0.0, %v544
  %v546 = vpop.f32.mrf.mxu0
  %547 = vmatprep.mubr.f32.mxu0 0.0
  %548 = vmatmul.mubr.f32.gmra.mxu0 %v195
  %v549 = vpop.f32.mrf.mxu0
  %v550 = vadd.f32 0.0, %v549
  %v551 = vpop.f32.mrf.mxu0
  %552 = vmatprep.mubr.f32.mxu0 0.0
  %553 = vmatmul.mubr.f32.gmra.mxu0 %v196
  %v554 = vpop.f32.mrf.mxu0
  %v555 = vadd.f32 0.0, %v554
  %v556 = vpop.f32.mrf.mxu0
  %557 = vmatprep.mubr.f32.mxu0 0.0
  %558 = vmatmul.mubr.f32.gmra.mxu0 %v197
  %v559 = vpop.f32.mrf.mxu0
  %v560 = vadd.f32 0.0, %v559
  %v561 = vpop.f32.mrf.mxu0
  %562 = vmatprep.mubr.f32.mxu0 0.0
  %563 = vmatmul.mubr.f32.gmra.mxu0 %v198
  %v564 = vpop.f32.mrf.mxu0
  %v565 = vadd.f32 0.0, %v564
  %v566 = vpop.f32.mrf.mxu0
  %567 = vmatprep.mubr.f32.mxu0 0.0
  %568 = vmatmul.mubr.f32.gmra.mxu0 %v199
  %v569 = vpop.f32.mrf.mxu0
  %v570 = vadd.f32 0.0, %v569
  %v571 = vpop.f32.mrf.mxu0
  %572 = vmatprep.mubr.f32.mxu0 0.0
  %573 = vmatmul.mubr.f32.gmra.mxu0 %v200
  %v574 = vpop.f32.mrf.mxu0
  %v575 = vadd.f32 0.0, %v574
  %v576 = vpop.f32.mrf.mxu0
  %577 = vmatprep.mubr.f32.mxu0 0.0
  %578 = vmatmul.mubr.f32.gmra.mxu0 %v201
  %v579 = vpop.f32.mrf.mxu0
  %v580 = vadd.f32 0.0, %v579
  %v581 = vpop.f32.mrf.mxu0
  %582 = vmatprep.mubr.f32.mxu0 0.0
  %583 = vmatmul.mubr.f32.gmra.mxu0 %v202
  %v584 = vpop.f32.mrf.mxu0
  %v585 = vadd.f32 0.0, %v584
  %v586 = vpop.f32.mrf.mxu0
  %587 = vmatprep.mubr.f32.mxu0 0.0
  %588 = vmatmul.mubr.f32.gmra.mxu0 %v203
  %v589 = vpop.f32.mrf.mxu0
  %v590 = vadd.f32 0.0, %v589
  %v591 = vpop.f32.mrf.mxu0
  %592 = vmatprep.mubr.f32.mxu0 0.0
  %593 = vmatmul.mubr.f32.gmra.mxu0 %v204
  %v594 = vpop.f32.mrf.mxu0
  %v595 = vadd.f32 0.0, %v594
  %v596 = vpop.f32.mrf.mxu0
  %597 = vmatprep.mubr.f32.mxu0 0.0
  %598 = vmatmul.mubr.f32.gmra.mxu0 %v205
  %v599 = vpop.f32.mrf.mxu0
  %v600 = vadd.f32 0.0, %v599
  %v601 = vpop.f32.mrf.mxu0
  %602 = vmatprep.mubr.f32.mxu0 0.0
  %603 = vmatmul.mubr.f32.gmra.mxu0 %v206
  %v604 = vpop.f32.mrf.mxu0
  %v605 = vadd.f32 0.0, %v604
  %v606 = vpop.f32.mrf.mxu0
  %607 = vdwg.mxu0
  %v608 = vadd.f32 %v79, %v290
  %v609 = vadd.f32 %v80, %v295
  %v610 = vadd.f32 %v81, %v300
  %v611 = vadd.f32 %v82, %v305
  %v612 = vadd.f32 %v83, %v310
  %v613 = vadd.f32 %v84, %v315
  %v614 = vadd.f32 %v85, %v320
  %v615 = vadd.f32 %v86, %v325
  %v616 = vadd.f32 %v87, %v330
  %v617 = vadd.f32 %v88, %v335
  %v618 = vadd.f32 %v89, %v340
  %v619 = vadd.f32 %v90, %v345
  %v620 = vadd.f32 %v91, %v350
  %v621 = vadd.f32 %v92, %v355
  %v622 = vadd.f32 %v93, %v360
  %v623 = vadd.f32 %v94, %v365
  %v624 = vadd.f32 %v95, %v370
  %v625 = vadd.f32 %v96, %v375
  %v626 = vadd.f32 %v97, %v380
  %v627 = vadd.f32 %v98, %v385
  %v628 = vadd.f32 %v99, %v390
  %v629 = vadd.f32 %v100, %v395
  %v630 = vadd.f32 %v101, %v400
  %v631 = vadd.f32 %v102, %v405
  %v632 = vadd.f32 %v103, %v410
  %v633 = vadd.f32 %v104, %v415
  %v634 = vadd.f32 %v105, %v420
  %v635 = vadd.f32 %v106, %v425
  %v636 = vadd.f32 %v107, %v430
  %v637 = vadd.f32 %v108, %v435
  %v638 = vadd.f32 %v109, %v440
  %v639 = vadd.f32 %v110, %v445
  %v640 = vadd.f32 %v111, %v450
  %v641 = vadd.f32 %v112, %v455
  %v642 = vadd.f32 %v113, %v460
  %v643 = vadd.f32 %v114, %v465
  %v644 = vadd.f32 %v115, %v470
  %v645 = vadd.f32 %v116, %v475
  %v646 = vadd.f32 %v117, %v480
  %v647 = vadd.f32 %v118, %v485
  %v648 = vadd.f32 %v119, %v490
  %v649 = vadd.f32 %v120, %v495
  %v650 = vadd.f32 %v121, %v500
  %v651 = vadd.f32 %v122, %v505
  %v652 = vadd.f32 %v123, %v510
  %v653 = vadd.f32 %v124, %v515
  %v654 = vadd.f32 %v125, %v520
  %v655 = vadd.f32 %v126, %v525
  %v656 = vadd.f32 %v127, %v530
  %v657 = vadd.f32 %v128, %v535
  %v658 = vadd.f32 %v129, %v540
  %v659 = vadd.f32 %v130, %v545
  %v660 = vadd.f32 %v131, %v550
  %v661 = vadd.f32 %v132, %v555
  %v662 = vadd.f32 %v133, %v560
  %v663 = vadd.f32 %v134, %v565
  %v664 = vadd.f32 %v135, %v570
  %v665 = vadd.f32 %v136, %v575
  %v666 = vadd.f32 %v137, %v580
  %v667 = vadd.f32 %v138, %v585
  %v668 = vadd.f32 %v139, %v590
  %v669 = vadd.f32 %v140, %v595
  %v670 = vadd.f32 %v141, %v600
  %v671 = vadd.f32 %v142, %v605
  %672 = vst [vmem:[#allocation2] sm:$0xff] %v608
  %673 = vst [vmem:[#allocation2 + $0x8] sm:$0xff] %v609
  %674 = vst [vmem:[#allocation2 + $0x10] sm:$0xff] %v610
  %675 = vst [vmem:[#allocation2 + $0x18] sm:$0xff] %v611
  %676 = vst [vmem:[#allocation2 + $0x20] sm:$0xff] %v612
  %677 = vst [vmem:[#allocation2 + $0x28] sm:$0xff] %v613
  %678 = vst [vmem:[#allocation2 + $0x30] sm:$0xff] %v614
  %679 = vst [vmem:[#allocation2 + $0x38] sm:$0xff] %v615
  %680 = vst [vmem:[#allocation2 + $0x40] sm:$0xff] %v616
  %681 = vst [vmem:[#allocation2 + $0x48] sm:$0xff] %v617
  %682 = vst [vmem:[#allocation2 + $0x50] sm:$0xff] %v618
  %683 = vst [vmem:[#allocation2 + $0x58] sm:$0xff] %v619
  %684 = vst [vmem:[#allocation2 + $0x60] sm:$0xff] %v620
  %685 = vst [vmem:[#allocation2 + $0x68] sm:$0xff] %v621
  %686 = vst [vmem:[#allocation2 + $0x70] sm:$0xff] %v622
  %687 = vst [vmem:[#allocation2 + $0x78] sm:$0xff] %v623
  %688 = vst [vmem:[#allocation2 + $0x80] sm:$0xff] %v624
  %689 = vst [vmem:[#allocation2 + $0x88] sm:$0xff] %v625
  %690 = vst [vmem:[#allocation2 + $0x90] sm:$0xff] %v626
  %691 = vst [vmem:[#allocation2 + $0x98] sm:$0xff] %v627
  %692 = vst [vmem:[#allocation2 + $0xa0] sm:$0xff] %v628
  %693 = vst [vmem:[#allocation2 + $0xa8] sm:$0xff] %v629
  %694 = vst [vmem:[#allocation2 + $0xb0] sm:$0xff] %v630
  %695 = vst [vmem:[#allocation2 + $0xb8] sm:$0xff] %v631
  %696 = vst [vmem:[#allocation2 + $0xc0] sm:$0xff] %v632
  %697 = vst [vmem:[#allocation2 + $0xc8] sm:$0xff] %v633
  %698 = vst [vmem:[#allocation2 + $0xd0] sm:$0xff] %v634
  %699 = vst [vmem:[#allocation2 + $0xd8] sm:$0xff] %v635
  %700 = vst [vmem:[#allocation2 + $0xe0] sm:$0xff] %v636
  %701 = vst [vmem:[#allocation2 + $0xe8] sm:$0xff] %v637
  %702 = vst [vmem:[#allocation2 + $0xf0] sm:$0xff] %v638
  %703 = vst [vmem:[#allocation2 + $0xf8] sm:$0xff] %v639
  %704 = vst [vmem:[#allocation2 + $0x100] sm:$0xff] %v640
  %705 = vst [vmem:[#allocation2 + $0x108] sm:$0xff] %v641
  %706 = vst [vmem:[#allocation2 + $0x110] sm:$0xff] %v642
  %707 = vst [vmem:[#allocation2 + $0x118] sm:$0xff] %v643
  %708 = vst [vmem:[#allocation2 + $0x120] sm:$0xff] %v644
  %709 = vst [vmem:[#allocation2 + $0x128] sm:$0xff] %v645
  %710 = vst [vmem:[#allocation2 + $0x130] sm:$0xff] %v646
  %711 = vst [vmem:[#allocation2 + $0x138] sm:$0xff] %v647
  %712 = vst [vmem:[#allocation2 + $0x140] sm:$0xff] %v648
  %713 = vst [vmem:[#allocation2 + $0x148] sm:$0xff] %v649
  %714 = vst [vmem:[#allocation2 + $0x150] sm:$0xff] %v650
  %715 = vst [vmem:[#allocation2 + $0x158] sm:$0xff] %v651
  %716 = vst [vmem:[#allocation2 + $0x160] sm:$0xff] %v652
  %717 = vst [vmem:[#allocation2 + $0x168] sm:$0xff] %v653
  %718 = vst [vmem:[#allocation2 + $0x170] sm:$0xff] %v654
  %719 = vst [vmem:[#allocation2 + $0x178] sm:$0xff] %v655
  %720 = vst [vmem:[#allocation2 + $0x180] sm:$0xff] %v656
  %721 = vst [vmem:[#allocation2 + $0x188] sm:$0xff] %v657
  %722 = vst [vmem:[#allocation2 + $0x190] sm:$0xff] %v658
  %723 = vst [vmem:[#allocation2 + $0x198] sm:$0xff] %v659
  %724 = vst [vmem:[#allocation2 + $0x1a0] sm:$0xff] %v660
  %725 = vst [vmem:[#allocation2 + $0x1a8] sm:$0xff] %v661
  %726 = vst [vmem:[#allocation2 + $0x1b0] sm:$0xff] %v662
  %727 = vst [vmem:[#allocation2 + $0x1b8] sm:$0xff] %v663
  %728 = vst [vmem:[#allocation2 + $0x1c0] sm:$0xff] %v664
  %729 = vst [vmem:[#allocation2 + $0x1c8] sm:$0xff] %v665
  %730 = vst [vmem:[#allocation2 + $0x1d0] sm:$0xff] %v666
  %731 = vst [vmem:[#allocation2 + $0x1d8] sm:$0xff] %v667
  %732 = vst [vmem:[#allocation2 + $0x1e0] sm:$0xff] %v668
  %733 = vst [vmem:[#allocation2 + $0x1e8] sm:$0xff] %v669
  %734 = vst [vmem:[#allocation2 + $0x1f0] sm:$0xff] %v670
  %735 = vst [vmem:[#allocation2 + $0x1f8] sm:$0xff] %v671
  // Predicated region
  $region14: #{slow_complex_conv2d.1} parent=0 // pred_check
    %p736 = pneg %p11
  $region15: #{slow_complex_conv2d.1} parent=0 // pred_check_branch
    %738 = sbr.rel (%p736) target = $region17
  $region16: #{slow_complex_conv2d.1} parent=0 // pred_region
    %v739 = vld [vmem:[#allocation2] sm:$0xff]
    %v740 = vld [vmem:[#allocation2 + $0x8] sm:$0xff]
    %v741 = vld [vmem:[#allocation2 + $0x10] sm:$0xff]
    %v742 = vld [vmem:[#allocation2 + $0x18] sm:$0xff]
    %v743 = vld [vmem:[#allocation2 + $0x20] sm:$0xff]
    %v744 = vld [vmem:[#allocation2 + $0x28] sm:$0xff]
    %v745 = vld [vmem:[#allocation2 + $0x30] sm:$0xff]
    %v746 = vld [vmem:[#allocation2 + $0x38] sm:$0xff]
    %v747 = vld [vmem:[#allocation2 + $0x40] sm:$0xff]
    %v748 = vld [vmem:[#allocation2 + $0x48] sm:$0xff]
    %v749 = vld [vmem:[#allocation2 + $0x50] sm:$0xff]
    %v750 = vld [vmem:[#allocation2 + $0x58] sm:$0xff]
    %v751 = vld [vmem:[#allocation2 + $0x60] sm:$0xff]
    %v752 = vld [vmem:[#allocation2 + $0x68] sm:$0xff]
    %v753 = vld [vmem:[#allocation2 + $0x70] sm:$0xff]
    %v754 = vld [vmem:[#allocation2 + $0x78] sm:$0xff]
    %v755 = vld [vmem:[#allocation2 + $0x80] sm:$0xff]
    %v756 = vld [vmem:[#allocation2 + $0x88] sm:$0xff]
    %v757 = vld [vmem:[#allocation2 + $0x90] sm:$0xff]
    %v758 = vld [vmem:[#allocation2 + $0x98] sm:$0xff]
    %v759 = vld [vmem:[#allocation2 + $0xa0] sm:$0xff]
    %v760 = vld [vmem:[#allocation2 + $0xa8] sm:$0xff]
    %v761 = vld [vmem:[#allocation2 + $0xb0] sm:$0xff]
    %v762 = vld [vmem:[#allocation2 + $0xb8] sm:$0xff]
    %v763 = vld [vmem:[#allocation2 + $0xc0] sm:$0xff]
    %v764 = vld [vmem:[#allocation2 + $0xc8] sm:$0xff]
    %v765 = vld [vmem:[#allocation2 + $0xd0] sm:$0xff]
    %v766 = vld [vmem:[#allocation2 + $0xd8] sm:$0xff]
    %v767 = vld [vmem:[#allocation2 + $0xe0] sm:$0xff]
    %v768 = vld [vmem:[#allocation2 + $0xe8] sm:$0xff]
    %v769 = vld [vmem:[#allocation2 + $0xf0] sm:$0xff]
    %v770 = vld [vmem:[#allocation2 + $0xf8] sm:$0xff]
    %v771 = vld [vmem:[#allocation2 + $0x100] sm:$0xff]
    %v772 = vld [vmem:[#allocation2 + $0x108] sm:$0xff]
    %v773 = vld [vmem:[#allocation2 + $0x110] sm:$0xff]
    %v774 = vld [vmem:[#allocation2 + $0x118] sm:$0xff]
    %v775 = vld [vmem:[#allocation2 + $0x120] sm:$0xff]
    %v776 = vld [vmem:[#allocation2 + $0x128] sm:$0xff]
    %v777 = vld [vmem:[#allocation2 + $0x130] sm:$0xff]
    %v778 = vld [vmem:[#allocation2 + $0x138] sm:$0xff]
    %v779 = vld [vmem:[#allocation2 + $0x140] sm:$0xff]
    %v780 = vld [vmem:[#allocation2 + $0x148] sm:$0xff]
    %v781 = vld [vmem:[#allocation2 + $0x150] sm:$0xff]
    %v782 = vld [vmem:[#allocation2 + $0x158] sm:$0xff]
    %v783 = vld [vmem:[#allocation2 + $0x160] sm:$0xff]
    %v784 = vld [vmem:[#allocation2 + $0x168] sm:$0xff]
    %v785 = vld [vmem:[#allocation2 + $0x170] sm:$0xff]
    %v786 = vld [vmem:[#allocation2 + $0x178] sm:$0xff]
    %v787 = vld [vmem:[#allocation2 + $0x180] sm:$0xff]
    %v788 = vld [vmem:[#allocation2 + $0x188] sm:$0xff]
    %v789 = vld [vmem:[#allocation2 + $0x190] sm:$0xff]
    %v790 = vld [vmem:[#allocation2 + $0x198] sm:$0xff]
    %v791 = vld [vmem:[#allocation2 + $0x1a0] sm:$0xff]
    %v792 = vld [vmem:[#allocation2 + $0x1a8] sm:$0xff]
    %v793 = vld [vmem:[#allocation2 + $0x1b0] sm:$0xff]
    %v794 = vld [vmem:[#allocation2 + $0x1b8] sm:$0xff]
    %v795 = vld [vmem:[#allocation2 + $0x1c0] sm:$0xff]
    %v796 = vld [vmem:[#allocation2 + $0x1c8] sm:$0xff]
    %v797 = vld [vmem:[#allocation2 + $0x1d0] sm:$0xff]
    %v798 = vld [vmem:[#allocation2 + $0x1d8] sm:$0xff]
    %v799 = vld [vmem:[#allocation2 + $0x1e0] sm:$0xff]
    %v800 = vld [vmem:[#allocation2 + $0x1e8] sm:$0xff]
    %v801 = vld [vmem:[#allocation2 + $0x1f0] sm:$0xff]
    %v802 = vld [vmem:[#allocation2 + $0x1f8] sm:$0xff]
    %803 = vst [vmem:[%s2] sm:$0xff] %v739
    %804 = vst [vmem:[%s2 + $0x8] sm:$0xff] %v740
    %805 = vst [vmem:[%s2 + $0x10] sm:$0xff] %v741
    %806 = vst [vmem:[%s2 + $0x18] sm:$0xff] %v742
    %807 = vst [vmem:[%s2 + $0x20] sm:$0xff] %v743
    %808 = vst [vmem:[%s2 + $0x28] sm:$0xff] %v744
    %809 = vst [vmem:[%s2 + $0x30] sm:$0xff] %v745
    %810 = vst [vmem:[%s2 + $0x38] sm:$0xff] %v746
    %811 = vst [vmem:[%s2 + $0x40] sm:$0xff] %v747
    %812 = vst [vmem:[%s2 + $0x48] sm:$0xff] %v748
    %813 = vst [vmem:[%s2 + $0x50] sm:$0xff] %v749
    %814 = vst [vmem:[%s2 + $0x58] sm:$0xff] %v750
    %815 = vst [vmem:[%s2 + $0x60] sm:$0xff] %v751
    %816 = vst [vmem:[%s2 + $0x68] sm:$0xff] %v752
    %817 = vst [vmem:[%s2 + $0x70] sm:$0xff] %v753
    %818 = vst [vmem:[%s2 + $0x78] sm:$0xff] %v754
    %819 = vst [vmem:[%s2 + $0x80] sm:$0xff] %v755
    %820 = vst [vmem:[%s2 + $0x88] sm:$0xff] %v756
    %821 = vst [vmem:[%s2 + $0x90] sm:$0xff] %v757
    %822 = vst [vmem:[%s2 + $0x98] sm:$0xff] %v758
    %823 = vst [vmem:[%s2 + $0xa0] sm:$0xff] %v759
    %824 = vst [vmem:[%s2 + $0xa8] sm:$0xff] %v760
    %825 = vst [vmem:[%s2 + $0xb0] sm:$0xff] %v761
    %826 = vst [vmem:[%s2 + $0xb8] sm:$0xff] %v762
    %827 = vst [vmem:[%s2 + $0xc0] sm:$0xff] %v763
    %828 = vst [vmem:[%s2 + $0xc8] sm:$0xff] %v764
    %829 = vst [vmem:[%s2 + $0xd0] sm:$0xff] %v765
    %830 = vst [vmem:[%s2 + $0xd8] sm:$0xff] %v766
    %831 = vst [vmem:[%s2 + $0xe0] sm:$0xff] %v767
    %832 = vst [vmem:[%s2 + $0xe8] sm:$0xff] %v768
    %833 = vst [vmem:[%s2 + $0xf0] sm:$0xff] %v769
    %834 = vst [vmem:[%s2 + $0xf8] sm:$0xff] %v770
    %835 = vst [vmem:[%s2 + $0x100] sm:$0xff] %v771
    %836 = vst [vmem:[%s2 + $0x108] sm:$0xff] %v772
    %837 = vst [vmem:[%s2 + $0x110] sm:$0xff] %v773
    %838 = vst [vmem:[%s2 + $0x118] sm:$0xff] %v774
    %839 = vst [vmem:[%s2 + $0x120] sm:$0xff] %v775
    %840 = vst [vmem:[%s2 + $0x128] sm:$0xff] %v776
    %841 = vst [vmem:[%s2 + $0x130] sm:$0xff] %v777
    %842 = vst [vmem:[%s2 + $0x138] sm:$0xff] %v778
    %843 = vst [vmem:[%s2 + $0x140] sm:$0xff] %v779
    %844 = vst [vmem:[%s2 + $0x148] sm:$0xff] %v780
    %845 = vst [vmem:[%s2 + $0x150] sm:$0xff] %v781
    %846 = vst [vmem:[%s2 + $0x158] sm:$0xff] %v782
    %847 = vst [vmem:[%s2 + $0x160] sm:$0xff] %v783
    %848 = vst [vmem:[%s2 + $0x168] sm:$0xff] %v784
    %849 = vst [vmem:[%s2 + $0x170] sm:$0xff] %v785
    %850 = vst [vmem:[%s2 + $0x178] sm:$0xff] %v786
    %851 = vst [vmem:[%s2 + $0x180] sm:$0xff] %v787
    %852 = vst [vmem:[%s2 + $0x188] sm:$0xff] %v788
    %853 = vst [vmem:[%s2 + $0x190] sm:$0xff] %v789
    %854 = vst [vmem:[%s2 + $0x198] sm:$0xff] %v790
    %855 = vst [vmem:[%s2 + $0x1a0] sm:$0xff] %v791
    %856 = vst [vmem:[%s2 + $0x1a8] sm:$0xff] %v792
    %857 = vst [vmem:[%s2 + $0x1b0] sm:$0xff] %v793
    %858 = vst [vmem:[%s2 + $0x1b8] sm:$0xff] %v794
    %859 = vst [vmem:[%s2 + $0x1c0] sm:$0xff] %v795
    %860 = vst [vmem:[%s2 + $0x1c8] sm:$0xff] %v796
    %861 = vst [vmem:[%s2 + $0x1d0] sm:$0xff] %v797
    %862 = vst [vmem:[%s2 + $0x1d8] sm:$0xff] %v798
    %863 = vst [vmem:[%s2 + $0x1e0] sm:$0xff] %v799
    %864 = vst [vmem:[%s2 + $0x1e8] sm:$0xff] %v800
    %865 = vst [vmem:[%s2 + $0x1f0] sm:$0xff] %v801
    %866 = vst [vmem:[%s2 + $0x1f8] sm:$0xff] %v802
  $region17: #{slow_complex_conv2d.1} parent=0 // pred_fallthru
    _
  // Predicated region
  $region18: #{slow_complex_conv2d.1} parent=0 // pred_check
    _
  $region19: #{slow_complex_conv2d.1} parent=0 // pred_check_branch
    %868 = sbr.rel (0) target = $region21
  $region20: #{slow_complex_conv2d.1} parent=0 // pred_region
    _
  $region21: #{slow_complex_conv2d.1} parent=0 // pred_fallthru
    _
  // Predicated region
  $region22: #{slow_complex_conv2d.1} parent=0 // pred_check
    _
  $region23: #{slow_complex_conv2d.1} parent=0 // pred_check_branch
    %870 = sbr.rel (0) target = $region25
  $region24: #{slow_complex_conv2d.1} parent=0 // pred_region
    _
  $region25: #{slow_complex_conv2d.1} parent=0 // pred_fallthru
    _

</llo_original>
